<compile_context>
chip_gen: v7x
topology: tpu7x:2x2x1
jax: 0.10.0
libtpu: 0.0.40
codegen_flags: <defaults>
</compile_context>

<pallas_src>
import functools

import jax
import jax.numpy as jnp
from jax.experimental import pallas as pl
from jax.experimental.pallas import tpu as pltpu


def _round_up(a: int, b: int) -> int:
    return (a + b - 1) // b * b


def _fc_kernel(*refs, use_bias, use_wnorm, single_k):
    """Computes one (tm, tn) output tile; accumulates over the K grid axis."""
    it = iter(refs)
    w_ref = next(it)                           # (1, tm, tk)
    x_ref = next(it)                           # (1, tk, tn)
    b_ref = next(it) if use_bias else None     # (1, tm, 1)
    g_ref = next(it) if use_wnorm else None    # (1, tm, 1)  weight-norm magnitude
    o_ref = next(it)                           # (1, tm, tn)
    acc_ref = None if single_k else next(it)   # (tm, tn) f32 scratch

    def epilogue(y):
        if use_wnorm:
            y = y * g_ref[0]                   # per-output-row scale (folded norm)
        if use_bias:
            y = y + b_ref[0]
        # TODO(synk): non-IDENTITY activations would be applied here elementwise.
        return y.astype(o_ref.dtype)

    part = jnp.dot(w_ref[0], x_ref[0], preferred_element_type=jnp.float32)

    if single_k:
        o_ref[0] = epilogue(part)
    else:
        k = pl.program_id(3)

        @pl.when(k == 0)
        def _():
            acc_ref[...] = jnp.zeros_like(acc_ref)

        acc_ref[...] += part

        @pl.when(k == pl.num_programs(3) - 1)
        def _():
            o_ref[0] = epilogue(acc_ref[...])


def inherited_fc_layer(x, weights, *, in_features, out_features,
                       bias=True, weight_norm=False,
                       tm=None, tn=None, tk=None, mxu_dtype=None):
    """x: (B, in_features, N); weights: (B, out_features, in_features + extras)."""
    B, IN, N = x.shape
    extras = (1 if bias else 0) + (1 if weight_norm else 0)
    assert IN == in_features
    assert weights.shape == (B, out_features, in_features + extras)
    OUT = out_features
    out_dtype = x.dtype

    # ---- split the packed weight buffer in the wrapper (free XLA slices) ----
    w = weights
    wnorm_col = None
    bias_col = None
    if weight_norm:
        wnorm_col = w[..., -1:]
        w = w[..., :-1]
    if bias:
        bias_col = w[..., -1:]
        w = w[..., :-1]
    # w: (B, OUT, IN) contiguous, tile-aligned matmul operand.

    if weight_norm:
        # torch: norm over dim=1 (the OUT axis) -> per-IN-column norm.  Fold the
        # separable 1/norm scale into x rows (IN*N mults instead of rescaling
        # the whole OUT*IN tile); wnorm is applied in the kernel epilogue.
        inv_norm = jax.lax.rsqrt(jnp.sum(w * w, axis=1, keepdims=True))  # (B,1,IN)
        x = x * jnp.swapaxes(inv_norm, 1, 2)                             # (B,IN,N)

    if mxu_dtype is not None:
        # Optional narrow MXU operands (e.g. jnp.bfloat16 on v6e/v7x);
        # accumulation stays f32 via preferred_element_type.
        w = w.astype(mxu_dtype)
        x = x.astype(mxu_dtype)

    # ---- tile sizes (MXU / lane aligned) ----
    if tm is None:
        tm = min(_round_up(OUT, 8), 256)
    if tn is None:
        tn = min(_round_up(N, 128), 512)        # lane-dense output (>= 128)
    if tk is None:
        tk = IN if IN <= 1024 else 512          # only K-tile when IN is large
    if tk >= IN:
        tk, IN_p = IN, IN                       # full-IN blocks, no K padding
    else:
        tk = _round_up(tk, 128)
        IN_p = _round_up(IN, tk)
    OUT_p = _round_up(OUT, tm)
    N_p = _round_up(N, tn)
    single_k = (IN_p == tk)

    # ---- zero-pad to tile multiples (cheap XLA pads, sliced off afterwards) --
    if OUT_p != OUT:
        w = jnp.pad(w, ((0, 0), (0, OUT_p - OUT), (0, 0)))
        if bias:
            bias_col = jnp.pad(bias_col, ((0, 0), (0, OUT_p - OUT), (0, 0)))
        if weight_norm:
            wnorm_col = jnp.pad(wnorm_col, ((0, 0), (0, OUT_p - OUT), (0, 0)))
    if IN_p != IN:
        w = jnp.pad(w, ((0, 0), (0, 0), (0, IN_p - IN)))
        x = jnp.pad(x, ((0, 0), (0, IN_p - IN), (0, 0)))
    if N_p != N:
        x = jnp.pad(x, ((0, 0), (0, 0), (0, N_p - N)))

    grid = (B, OUT_p // tm, N_p // tn, IN_p // tk)

    # Weight tile ignores the N-tile index (reused across N when single_k),
    # x ignores the OUT-tile index, output ignores K (resident accumulator).
    idx_w = lambda b, i, j, k: (b, i, k)
    idx_x = lambda b, i, j, k: (b, k, j)
    idx_o = lambda b, i, j, k: (b, i, j)
    idx_c = lambda b, i, j, k: (b, i, 0)

    in_specs = [pl.BlockSpec((1, tm, tk), idx_w),
                pl.BlockSpec((1, tk, tn), idx_x)]
    inputs = [w, x]
    if bias:
        in_specs.append(pl.BlockSpec((1, tm, 1), idx_c))
        inputs.append(bias_col)
    if weight_norm:
        in_specs.append(pl.BlockSpec((1, tm, 1), idx_c))
        inputs.append(wnorm_col)

    scratch_shapes = [] if single_k else [pltpu.VMEM((tm, tn), jnp.float32)]

    kernel = functools.partial(
        _fc_kernel, use_bias=bias, use_wnorm=weight_norm, single_k=single_k)

    cost = pl.CostEstimate(
        flops=2 * B * OUT * IN * N,
        transcendentals=0,
        bytes_accessed=4 * B * (OUT * IN + IN * N + OUT * N))

    y_padded = pl.pallas_call(
        kernel,
        out_shape=jax.ShapeDtypeStruct((B, OUT_p, N_p), out_dtype),
        grid_spec=pltpu.PrefetchScalarGridSpec(
            num_scalar_prefetch=0,
            grid=grid,
            in_specs=in_specs,
            out_specs=pl.BlockSpec((1, tm, tn), idx_o),
            scratch_shapes=scratch_shapes),
        compiler_params=pltpu.CompilerParams(
            dimension_semantics=("parallel", "parallel", "parallel", "arbitrary"),
            vmem_limit_bytes=32 * 1024 * 1024),
        cost_estimate=cost,
    )(*inputs)

    return y_padded[:, :OUT, :N]


def _reference(x, weights, *, bias=True, weight_norm=False):
    w = weights
    if weight_norm:
        wn = w[..., -1:]
        w = w[..., :-1]
    if bias:
        b = w[..., -1:]
        w = w[..., :-1]
    if weight_norm:
        norm = jnp.sqrt(jnp.sum(w * w, axis=1, keepdims=True))
        w = w * wn / norm
    y = jnp.matmul(w, x)
    if bias:
        y = y + b
    return y


if __name__ == "__main__":
    # Small deterministic example: batch=2, in_features=32, out_features=16,
    # N=8 points per batch element.  Module defaults: bias=True,
    # weight_norm=False, Activation.IDENTITY.
    B, IN, OUT, N = 2, 32, 16, 8
    key = jax.random.PRNGKey(0)
    kx, kw, kw2 = jax.random.split(key, 3)
    x = jax.random.normal(kx, (B, IN, N), dtype=jnp.float32)

    # Default config (bias column appended to the flattened weight matrix).
    weights = jax.random.normal(kw, (B, OUT, IN + 1), dtype=jnp.float32)
    y = inherited_fc_layer(x, weights, in_features=IN, out_features=OUT,
                           bias=True, weight_norm=False)
    y = jax.block_until_ready(y)
    y_ref = _reference(x, weights, bias=True, weight_norm=False)
    assert y.shape == (B, OUT, N)
    assert jnp.allclose(y, y_ref, atol=1e-4, rtol=1e-4)

    # weight_norm=True path (bias + weight_norm columns appended).
    weights_wn = jax.random.normal(kw2, (B, OUT, IN + 2), dtype=jnp.float32)
    y_wn = inherited_fc_layer(x, weights_wn, in_features=IN, out_features=OUT,
                              bias=True, weight_norm=True)
    y_wn = jax.block_until_ready(y_wn)
    y_wn_ref = _reference(x, weights_wn, bias=True, weight_norm=True)
    assert jnp.allclose(y_wn, y_wn_ref, atol=1e-4, rtol=1e-4)

    print("KERNEL_OK")
</pallas_src>

<mosaic_0001>
module attributes {stable_mosaic.version = 11 : i64} {
  func.func @_fc_kernel(%arg0: i32, %arg1: i32, %arg2: i32, %arg3: i32, %arg4: memref<1x16x32xf32, #tpu.memory_space<vmem>>, %arg5: memref<1x32x128xf32, #tpu.memory_space<vmem>>, %arg6: memref<1x16x1xf32, #tpu.memory_space<vmem>>, %arg7: memref<1x16x128xf32, #tpu.memory_space<vmem>>) attributes {dimension_semantics = [#tpu.dimension_semantics<parallel>, #tpu.dimension_semantics<parallel>, #tpu.dimension_semantics<parallel>, #tpu.dimension_semantics<arbitrary>], iteration_bounds = array<i64: 2, 1, 1, 1>, scalar_prefetch = 0 : i64, scratch_operands = 0 : i64, tpu.core_type = #tpu.core_type<tc>, window_params = [{transform_indices = @transform_0, window_bounds = array<i64: 1, 16, 32>}, {transform_indices = @transform_1, window_bounds = array<i64: 1, 32, 128>}, {transform_indices = @transform_2, window_bounds = array<i64: 1, 16, 1>}, {transform_indices = @transform_3, window_bounds = array<i64: 1, 16, 128>}]} {
    %c0 = arith.constant 0 : index
    %c0_0 = arith.constant 0 : index
    %c0_1 = arith.constant 0 : index
    %0 = vector.load %arg4[%c0, %c0_0, %c0_1] : memref<1x16x32xf32, #tpu.memory_space<vmem>>, vector<1x16x32xf32>
    %1 = vector.shape_cast %0 : vector<1x16x32xf32> to vector<16x32xf32>
    %c0_2 = arith.constant 0 : index
    %c0_3 = arith.constant 0 : index
    %c0_4 = arith.constant 0 : index
    %2 = vector.load %arg5[%c0_2, %c0_3, %c0_4] : memref<1x32x128xf32, #tpu.memory_space<vmem>>, vector<1x32x128xf32>
    %3 = vector.shape_cast %2 : vector<1x32x128xf32> to vector<32x128xf32>
    %cst = arith.constant dense<0.000000e+00> : vector<16x128xf32>
    %4 = tpu.matmul %1, %3, %cst {dimension_numbers = #tpu.dot_dimension_numbers<[1], [0], [0], [1], [0, 0, 1, 1], [], []>} : vector<16x32xf32>, vector<32x128xf32>, vector<16x128xf32> -> vector<16x128xf32>
    %c0_5 = arith.constant 0 : index
    %c0_6 = arith.constant 0 : index
    %c0_7 = arith.constant 0 : index
    %5 = vector.load %arg6[%c0_5, %c0_6, %c0_7] : memref<1x16x1xf32, #tpu.memory_space<vmem>>, vector<1x16x1xf32>
    %6 = vector.shape_cast %5 : vector<1x16x1xf32> to vector<16x1xf32>
    %7 = vector.broadcast %6 : vector<16x1xf32> to vector<16x128xf32>
    %8 = arith.addf %4, %7 : vector<16x128xf32>
    %c0_8 = arith.constant 0 : index
    %c0_9 = arith.constant 0 : index
    %c0_10 = arith.constant 0 : index
    %9 = vector.load %arg7[%c0_8, %c0_9, %c0_10] : memref<1x16x128xf32, #tpu.memory_space<vmem>>, vector<1x16x128xf32>
    %10 = vector.shape_cast %9 : vector<1x16x128xf32> to vector<16x128xf32>
    %11 = vector.shape_cast %8 : vector<16x128xf32> to vector<1x16x128xf32>
    tpu.vector_store %arg7[%c0_8, %c0_9, %c0_10], %11 {strides = array<i32>} : memref<1x16x128xf32, #tpu.memory_space<vmem>>, vector<1x16x128xf32>,
    return
  }
  func.func @transform_0(%arg0: i32, %arg1: i32, %arg2: i32, %arg3: i32) -> (i32, i32, i32) {
    %c0_i32 = arith.constant 0 : i32
    return %arg0, %arg1, %arg3 : i32, i32, i32
  }
  func.func @transform_1(%arg0: i32, %arg1: i32, %arg2: i32, %arg3: i32) -> (i32, i32, i32) {
    %c0_i32 = arith.constant 0 : i32
    return %arg0, %arg3, %arg2 : i32, i32, i32
  }
  func.func @transform_2(%arg0: i32, %arg1: i32, %arg2: i32, %arg3: i32) -> (i32, i32, i32) {
    %c0_i32 = arith.constant 0 : i32
    %c0_i32_0 = arith.constant 0 : i32
    return %arg0, %arg1, %c0_i32 : i32, i32, i32
  }
  func.func @transform_3(%arg0: i32, %arg1: i32, %arg2: i32, %arg3: i32) -> (i32, i32, i32) {
    %c0_i32 = arith.constant 0 : i32
    return %arg0, %arg1, %arg2 : i32, i32, i32
  }
}

</mosaic_0001>

<llo_original>
// kernel: tpu_custom_call.1
$region0: #{tpu_custom_call.1}
  #allocation0 [shape = 'u32[]', space=smem, size = 0x4, offset = 0x4, fixed_abs, tag = 'smem constant byte address 0x4 - core index']
  #allocation1 [shape = 'u32[144,128]{1,0:T(1,128)}', space=vmem, size = 0x12000, scoped, tag = 'internal scratch']
  %s0 = inlined_call_operand.vmem [shape: f32[2,16,32], index: 0, kind: input, shape index: {}]
  %s1 = inlined_call_operand.hbm [shape: f32[2,32,128], index: 1, kind: input, shape index: {}]
  %s2 = inlined_call_operand.vmem [shape: f32[2,16,1], index: 2, kind: input, shape index: {}]
  %s3 = inlined_call_operand.hbm [shape: f32[2,16,128], index: 3, kind: output, shape index: {}]
  %s4 = sld [smem:[#allocation0]]
  $region49: #{tpu_custom_call.1} parent=0
    _
  %s6 = ssub.s32 1, %s4
  %s7 = scalar_select 0, %s6, %s4
  $region1: #{tpu_custom_call.1} parent=0
    #allocation2 [shape = 'u8[32768]{0}', space=vmem, size = 0x8000, scoped, tag = 'input window, operand 1']
    #allocation3 [shape = 's32[2]{0}', space=sflag, size = 0x8, scoped, tag = 'scoped memory for tpu_custom_call.1']
    #allocation4 [shape = 's32[2]{0}', space=sflag, size = 0x8, scoped, tag = 'scoped memory for tpu_custom_call.1']
    #allocation5 [shape = 'u8[16384]{0}', space=vmem, size = 0x4000, scoped, tag = 'output window, operand 0']
    %8 = vsyncpa [#allocation3], 0
    %s9 = scalar_lea.sflag [#allocation3], 1
    %10 = vsyncpa %s9, 0
    %11 = vsyncpa [#allocation4], 0
    %s12 = scalar_lea.sflag [#allocation4], 1
    %13 = vsyncpa %s12, 0
    loop: start=0, step=1, limit=4
    $region2: #{tpu_custom_call.1} parent=1 // loop_pre_header
      _
    $region3: #{tpu_custom_call.1} parent=1 // loop_header
      %s15 = sphi 0, %s19
      %p16 = scmp.ge.s32.totalorder %s15, 4
      %s22 = sphi 0, %s48
      %s23 = sphi 0, %s44
      %s24 = sphi 0, %s40
      %s25 = sphi 0, %s36
      %s26 = sphi 0, %s22
      %s27 = sphi 0, %s23
      %s28 = sphi 0, %s24
      %s29 = sphi 0, %s25
      %s30 = sphi 0, %s26
      %s31 = sphi 0, %s27
      %s32 = sphi 0, %s28
      %s33 = sphi 0, %s29
      %s55 = sphi 0, %s57
      %s58 = sphi 0, %s55
      %s59 = sphi 0, %s58
      %s75 = sphi 0, %s59
      %s85 = sphi 0, %s87
      %s88 = sphi 0, %s85
      %s89 = sphi 0, %s88
      %s105 = sphi 0, %s89
      %s113 = sphi 0, %s115
      %s116 = sphi 0, %s113
      %s117 = sphi 0, %s116
      %s133 = sphi 0, %s117
      %s143 = sphi 0, %s145
      %s146 = sphi 0, %s143
      %s147 = sphi 0, %s146
      %s163 = sphi 0, %s147
    $region4: #{tpu_custom_call.1} parent=1 // loop_header_branch
      %18 = sbr.rel (%p16) target = $region8
    $region5: #{tpu_custom_call.1} parent=1 // loop_body
      %s20 = ssub.s32 %s15, 1
      %s21 = ssub.s32 %s15, 2
      %s34 = sadd.s32 1, %s25
      %p35 = scmp.ge.s32.totalorder %s34, 1
      %s36 = scalar_select %p35, 0, %s34
      %s37 = sadd.s32 1, %s24
      %s38 = scalar_select %p35, %s37, %s24
      %p39 = scmp.ge.s32.totalorder %s38, 1
      %s40 = scalar_select %p39, 0, %s38
      %s41 = sadd.s32 1, %s23
      %s42 = scalar_select %p39, %s41, %s23
      %p43 = scmp.ge.s32.totalorder %s42, 1
      %s44 = scalar_select %p43, 0, %s42
      %s45 = sadd.s32 1, %s22
      %s46 = scalar_select %p43, %s45, %s22
      %p47 = scmp.ge.s32.totalorder %s46, 2
      %s48 = scalar_select %p47, 0, %s46
      %s49 = ssub.s32 %s22, %s48
      %s50 = ssub.s32 %s23, %s44
      %s51 = sor.u32 %s49, %s50
      %s52 = ssub.s32 %s25, %s36
      %s53 = sor.u32 %s51, %s52
      %p54 = scmp.eq.s32.totalorder %s53, 0
      %s56 = sadd.s32 %s55, 1
      %s57 = scalar_select %p54, %s55, %s56
      %p60 = pneg %p54
      %p61 = scmp.eq.s32.totalorder %s15, 1
      %p62 = por %p60, %p61
      %p63 = scmp.ne.s32.totalorder %s55, %s58
      %p64 = scmp.eq.s32.totalorder %s15, 0
      %p65 = por %p63, %p64
      %p66 = scmp.ne.s32.totalorder %s55, %s58
      %p67 = scmp.eq.s32.totalorder %s20, 1
      %p68 = por %p66, %p67
      %p69 = scmp.ne.s32.totalorder %s58, %s59
      %p70 = scmp.eq.s32.totalorder %s20, 0
      %p71 = por %p69, %p70
      %p72 = scmp.ne.s32.totalorder %s58, %s59
      %p73 = scmp.eq.s32.totalorder %s21, 1
      %p74 = por %p72, %p73
      %p76 = scmp.ne.s32.totalorder %s59, %s75
      %p77 = scmp.eq.s32.totalorder %s21, 0
      %p78 = por %p76, %p77
      %s79 = ssub.s32 %s22, %s48
      %s80 = ssub.s32 %s25, %s36
      %s81 = sor.u32 %s79, %s80
      %s82 = ssub.s32 %s24, %s40
      %s83 = sor.u32 %s81, %s82
      %p84 = scmp.eq.s32.totalorder %s83, 0
      %s86 = sadd.s32 %s85, 1
      %s87 = scalar_select %p84, %s85, %s86
      %p90 = pneg %p84
      %p91 = scmp.eq.s32.totalorder %s15, 1
      %p92 = por %p90, %p91
      %p93 = scmp.ne.s32.totalorder %s85, %s88
      %p94 = scmp.eq.s32.totalorder %s15, 0
      %p95 = por %p93, %p94
      %p96 = scmp.ne.s32.totalorder %s85, %s88
      %p97 = scmp.eq.s32.totalorder %s20, 1
      %p98 = por %p96, %p97
      %p99 = scmp.ne.s32.totalorder %s88, %s89
      %p100 = scmp.eq.s32.totalorder %s20, 0
      %p101 = por %p99, %p100
      %p102 = scmp.ne.s32.totalorder %s88, %s89
      %p103 = scmp.eq.s32.totalorder %s21, 1
      %p104 = por %p102, %p103
      %p106 = scmp.ne.s32.totalorder %s89, %s105
      %p107 = scmp.eq.s32.totalorder %s21, 0
      %p108 = por %p106, %p107
      %s109 = ssub.s32 %s22, %s48
      %s110 = ssub.s32 %s23, %s44
      %s111 = sor.u32 %s109, %s110
      %p112 = scmp.eq.s32.totalorder %s111, 0
      %s114 = sadd.s32 %s113, 1
      %s115 = scalar_select %p112, %s113, %s114
      %p118 = pneg %p112
      %p119 = scmp.eq.s32.totalorder %s15, 1
      %p120 = por %p118, %p119
      %p121 = scmp.ne.s32.totalorder %s113, %s116
      %p122 = scmp.eq.s32.totalorder %s15, 0
      %p123 = por %p121, %p122
      %p124 = scmp.ne.s32.totalorder %s113, %s116
      %p125 = scmp.eq.s32.totalorder %s20, 1
      %p126 = por %p124, %p125
      %p127 = scmp.ne.s32.totalorder %s116, %s117
      %p128 = scmp.eq.s32.totalorder %s20, 0
      %p129 = por %p127, %p128
      %p130 = scmp.ne.s32.totalorder %s116, %s117
      %p131 = scmp.eq.s32.totalorder %s21, 1
      %p132 = por %p130, %p131
      %p134 = scmp.ne.s32.totalorder %s117, %s133
      %p135 = scmp.eq.s32.totalorder %s21, 0
      %p136 = por %p134, %p135
      %s137 = ssub.s32 %s22, %s48
      %s138 = ssub.s32 %s23, %s44
      %s139 = sor.u32 %s137, %s138
      %s140 = ssub.s32 %s24, %s40
      %s141 = sor.u32 %s139, %s140
      %p142 = scmp.eq.s32.totalorder %s141, 0
      %s144 = sadd.s32 %s143, 1
      %s145 = scalar_select %p142, %s143, %s144
      %p148 = pneg %p142
      %p149 = scmp.eq.s32.totalorder %s15, 1
      %p150 = por %p148, %p149
      %p151 = scmp.ne.s32.totalorder %s143, %s146
      %p152 = scmp.eq.s32.totalorder %s15, 0
      %p153 = por %p151, %p152
      %p154 = scmp.ne.s32.totalorder %s143, %s146
      %p155 = scmp.eq.s32.totalorder %s20, 1
      %p156 = por %p154, %p155
      %p157 = scmp.ne.s32.totalorder %s146, %s147
      %p158 = scmp.eq.s32.totalorder %s20, 0
      %p159 = por %p157, %p158
      %p160 = scmp.ne.s32.totalorder %s146, %s147
      %p161 = scmp.eq.s32.totalorder %s21, 1
      %p162 = por %p160, %p161
      %p164 = scmp.ne.s32.totalorder %s147, %s163
      %p165 = scmp.eq.s32.totalorder %s21, 0
      %p166 = por %p164, %p165
      %p167 = scmp.le.s32.totalorder 1, %s15
      %p168 = scmp.lt.s32.totalorder %s15, 3
      %p169 = pnand %p167, %p168
      %p170 = pneg %p169
      // Predicated region
      $region9: #{tpu_custom_call.1} parent=5 // pred_check
        _
      $region10: #{tpu_custom_call.1} parent=5 // pred_check_branch
        %172 = sbr.rel (%p169) target = $region12
      $region11: #{tpu_custom_call.1} parent=5 // pred_region
        %s173 = ssub.s32 %s15, 1
      $region12: #{tpu_custom_call.1} parent=5 // pred_fallthru
        _
      %p174 = scmp.lt.s32.totalorder %s15, 2
      // Predicated region
      $region13: #{tpu_custom_call.1} parent=5 // pred_check
        %p175 = pneg %p174
      $region14: #{tpu_custom_call.1} parent=5 // pred_check_branch
        %177 = sbr.rel (%p175) target = $region16
      $region15: #{tpu_custom_call.1} parent=5 // pred_region
        // Predicated region
        $region17: #{tpu_custom_call.1} parent=15 // pred_check
          %p178 = pneg %p65
        $region18: #{tpu_custom_call.1} parent=15 // pred_check_branch
          %180 = sbr.rel (%p178) target = $region20
        $region19: #{tpu_custom_call.1} parent=15 // pred_region
          %s181 = smul.u32 2, %s23
          %p182 = scmp.lt.s32.totalorder %s22, 1
          %s183 = scalar_select %p182, %s22, 1
          %p184 = scmp.lt.s32.totalorder %s181, 1
          %s185 = scalar_select %p184, %s181, 1
          %p186 = scmp.lt.s32.totalorder %s25, 0
          %s187 = scalar_select %p186, %s25, 0
          %s188 = sadd.s32 %s187, %s185
          %s189 = smul.addr %s183, 2
          %s190 = sadd.s32 %s188, %s189
          %s191 = smul.addr %s190, 8
          %s192 = scalar_lea.vmem %s0, %s191
          %s193 = smul.u32 2, %s23
        $region20: #{tpu_custom_call.1} parent=15 // pred_fallthru
          _
        // Predicated region
        $region21: #{tpu_custom_call.1} parent=15 // pred_check
          %p194 = pneg %p95
        $region22: #{tpu_custom_call.1} parent=15 // pred_check_branch
          %196 = sbr.rel (%p194) target = $region24
        $region23: #{tpu_custom_call.1} parent=15 // pred_region
          %s197 = sand.u32 %s85, 1
          %s198 = scalar_lea.sflag [#allocation3], %s197
          %s199 = sand.u32 %s85, 1
          %s200 = smul.addr %s199, 32
          %s201 = scalar_lea.vmem [#allocation2], %s200
          %s202 = smul.u32 4, %s25
          %s204 = ssub.s32 512, 512
          %205 = vsyncadd %s198, %s204
          %s206 = sadd.s32 %s24, %s202
          %s207 = smul.addr %s22, 4
          %s208 = sadd.s32 %s206, %s207
          %s209 = smul.addr %s208, 128
          %s210 = scalar_lea.hbm %s1, %s209
          %s211 = sshll.u32 %s201, 4
          %s212 = int_to_ptr.vmem [resolvable:$true] %s211
          %217 = dma.hbm_to_vmem [thread:$0]  %s210, 512, %s212, %s198, 128, 128, 8
        $region24: #{tpu_custom_call.1} parent=15 // pred_fallthru
          _
        // Predicated region
        $region25: #{tpu_custom_call.1} parent=15 // pred_check
          %p218 = pneg %p123
        $region26: #{tpu_custom_call.1} parent=15 // pred_check_branch
          %220 = sbr.rel (%p218) target = $region28
        $region27: #{tpu_custom_call.1} parent=15 // pred_region
          %s221 = smul.u32 2, %s23
          %p222 = scmp.lt.s32.totalorder %s22, 1
          %s223 = scalar_select %p222, %s22, 1
          %p224 = scmp.lt.s32.totalorder %s221, 1
          %s225 = scalar_select %p224, %s221, 1
          %s226 = smul.addr %s223, 2
          %s227 = sadd.s32 %s225, %s226
          %s228 = smul.addr %s227, 8
          %s229 = scalar_lea.vmem %s2, %s228
          %s230 = smul.u32 2, %s23
        $region28: #{tpu_custom_call.1} parent=15 // pred_fallthru
          _
      $region16: #{tpu_custom_call.1} parent=5 // pred_fallthru
        _
      %p231 = scmp.le.s32.totalorder 1, %s15
      %p232 = scmp.lt.s32.totalorder %s15, 3
      %p233 = pnand %p231, %p232
      %p234 = pneg %p233
      // Predicated region
      $region29: #{tpu_custom_call.1} parent=5 // pred_check
        _
      $region30: #{tpu_custom_call.1} parent=5 // pred_check_branch
        %236 = sbr.rel (%p233) target = $region32
      $region31: #{tpu_custom_call.1} parent=5 // pred_region
        %s237 = ssub.s32 %s15, 1
        %s238 = sand.u32 %s88, 1
        %s239 = scalar_lea.sflag [#allocation3], %s238
        %s240 = sand.u32 %s88, 1
        %s241 = smul.addr %s240, 32
        %s242 = scalar_lea.vmem [#allocation2], %s241
        // Predicated region
        $region33: #{tpu_custom_call.1} parent=31 // pred_check
          %p243 = pneg %p101
        $region34: #{tpu_custom_call.1} parent=31 // pred_check_branch
          %245 = sbr.rel (%p243) target = $region36
        $region35: #{tpu_custom_call.1} parent=31 // pred_region
          %246 = dma.done %s239, 512
        $region36: #{tpu_custom_call.1} parent=31 // pred_fallthru
          _
        %s247 = smul.u32 2, %s27
        %p248 = scmp.lt.s32.totalorder %s26, 1
        %s249 = scalar_select %p248, %s26, 1
        %p250 = scmp.lt.s32.totalorder %s247, 1
        %s251 = scalar_select %p250, %s247, 1
        %p252 = scmp.lt.s32.totalorder %s29, 0
        %s253 = scalar_select %p252, %s29, 0
        %s254 = sadd.s32 %s253, %s251
        %s255 = smul.addr %s249, 2
        %s256 = sadd.s32 %s254, %s255
        %s257 = smul.addr %s256, 8
        %s258 = scalar_lea.vmem %s0, %s257
        %p259 = pneg %p71
        %p260 = pneg %p68
        %s261 = sand.u32 %s88, 1
        %s262 = scalar_lea.sflag [#allocation3], %s261
        %s263 = sand.u32 %s88, 1
        %s264 = smul.addr %s263, 32
        %s265 = scalar_lea.vmem [#allocation2], %s264
        %p266 = pneg %p101
        %p267 = pneg %p98
        %s268 = smul.u32 2, %s27
        %p269 = scmp.lt.s32.totalorder %s26, 1
        %s270 = scalar_select %p269, %s26, 1
        %p271 = scmp.lt.s32.totalorder %s268, 1
        %s272 = scalar_select %p271, %s268, 1
        %s273 = smul.addr %s270, 2
        %s274 = sadd.s32 %s272, %s273
        %s275 = smul.addr %s274, 8
        %s276 = scalar_lea.vmem %s2, %s275
        %p277 = pneg %p129
        %p278 = pneg %p126
        %p279 = pneg %p159
        %p280 = pneg %p156
        %s281 = sand.u32 %s146, 1
        %s282 = scalar_lea.sflag [#allocation4], %s281
        %s283 = sand.u32 %s146, 1
        %s284 = smul.addr %s283, 16
        %s285 = scalar_lea.vmem [#allocation5], %s284
        %s286 = smul.u32 2, %s27
        %p287 = scmp.lt.s32.totalorder %s26, 1
        %s288 = scalar_select %p287, %s26, 1
        %p289 = scmp.lt.s32.totalorder %s286, 1
        %s290 = scalar_select %p289, %s286, 1
        %p291 = scmp.lt.s32.totalorder %s29, 0
        %s292 = scalar_select %p291, %s29, 0
        %s293 = sadd.s32 %s292, %s290
        %s294 = smul.addr %s288, 2
        %s295 = sadd.s32 %s293, %s294
        %s296 = smul.addr %s295, 8
        %s297 = scalar_lea.vmem %s0, %s296
        %s298 = smul.u32 2, %s27
        %s299 = smul.u32 4, %s29
        %s300 = smul.u32 2, %s27
        %p301 = scmp.lt.s32.totalorder %s26, 1
        %s302 = scalar_select %p301, %s26, 1
        %p303 = scmp.lt.s32.totalorder %s300, 1
        %s304 = scalar_select %p303, %s300, 1
        %s305 = smul.addr %s302, 2
        %s306 = sadd.s32 %s304, %s305
        %s307 = smul.addr %s306, 8
        %s308 = scalar_lea.vmem %s2, %s307
        %s309 = smul.u32 2, %s27
        %s310 = smul.u32 2, %s27
        %v311 = vld [vmem:[%s297] sm:$0xff]
        %v312 = vld [vmem:[%s297 + $0x8] sm:$0xff]
        %v313 = vld [vmem:[%s242] sm:$0xff]
        %v314 = vld [vmem:[%s242 + $0x8] sm:$0xff]
        %v315 = vld [vmem:[%s242 + $0x10] sm:$0xff]
        %v316 = vld [vmem:[%s242 + $0x18] sm:$0xff]
        %v317 = vld [vmem:[%s308] sm:$0xff]
        %v318 = vld [vmem:[%s308 + $0x8] sm:$0xff]
        %320 = vset.pattern.permute.xlu0 0
        %321 = vperm.xlu0 %320, %v317
        %v322 = vpop.permute.xlu0 %321
        %325 = vset.pattern.permute.xlu0 0
        %326 = vperm.xlu0 %325, %v318
        %v327 = vpop.permute.xlu0 %326
        %vm329 = vcmask 261120
        %v331 = vsel %vm329, %v311, 0
        %v334 = vsel %vm329, %v312, 0
        %336 = vmatprep.subr.mxu0 0.0
        %337 = vmatpush1.msra.mxu0 %v313
        %338 = vmatprep.subr.mxu0 0.0
        %339 = vmatpush1.msra.mxu0 %v314
        %340 = vmatprep.subr.mxu0 0.0
        %341 = vmatpush1.msra.mxu0 %v315
        %342 = vmatprep.subr.mxu0 0.0
        %343 = vmatpush1.msra.mxu0 %v316
        %344 = vmatprep.subr.mxu0 0.0
        %345 = vmatpush1.msra.mxu0 0.0
        %346 = vmatprep.subr.mxu0 0.0
        %347 = vmatpush1.msra.mxu0 0.0
        %348 = vmatprep.subr.mxu0 0.0
        %349 = vmatpush1.msra.mxu0 0.0
        %350 = vmatprep.subr.mxu0 0.0
        %351 = vmatpush1.msra.mxu0 0.0
        %352 = vmatprep.subr.mxu0 0.0
        %353 = vmatpush1.msra.mxu0 0.0
        %354 = vmatprep.subr.mxu0 0.0
        %355 = vmatpush1.msra.mxu0 0.0
        %356 = vmatprep.subr.mxu0 0.0
        %357 = vmatpush1.msra.mxu0 0.0
        %358 = vmatprep.subr.mxu0 0.0
        %359 = vmatpush1.msra.mxu0 0.0
        %360 = vmatprep.subr.mxu0 0.0
        %361 = vmatpush1.msra.mxu0 0.0
        %362 = vmatprep.subr.mxu0 0.0
        %363 = vmatpush1.msra.mxu0 0.0
        %364 = vmatprep.subr.mxu0 0.0
        %365 = vmatpush1.msra.mxu0 0.0
        %366 = vmatprep.subr.mxu0 0.0
        %367 = vmatpush1.msra.mxu0 0.0
        %368 = vmatprep.subr.mxu0 0.0
        %369 = vmatpush1.msra.mxu0 0.0
        %370 = vmatprep.subr.mxu0 0.0
        %371 = vmatpush1.msra.mxu0 0.0
        %372 = vmatprep.subr.mxu0 0.0
        %373 = vmatpush1.msra.mxu0 0.0
        %374 = vmatprep.subr.mxu0 0.0
        %375 = vmatpush1.msra.mxu0 0.0
        %376 = vmatprep.subr.mxu0 0.0
        %377 = vmatpush1.msra.mxu0 0.0
        %378 = vmatprep.subr.mxu0 0.0
        %379 = vmatpush1.msra.mxu0 0.0
        %380 = vmatprep.subr.mxu0 0.0
        %381 = vmatpush1.msra.mxu0 0.0
        %382 = vmatprep.subr.mxu0 0.0
        %383 = vmatpush1.msra.mxu0 0.0
        %384 = vmatprep.subr.mxu0 0.0
        %385 = vmatpush1.msra.mxu0 0.0
        %386 = vmatprep.subr.mxu0 0.0
        %387 = vmatpush1.msra.mxu0 0.0
        %388 = vmatprep.subr.mxu0 0.0
        %389 = vmatpush1.msra.mxu0 0.0
        %390 = vmatprep.subr.mxu0 0.0
        %391 = vmatpush1.msra.mxu0 0.0
        %392 = vmatprep.subr.mxu0 0.0
        %393 = vmatpush1.msra.mxu0 0.0
        %394 = vmatprep.subr.mxu0 0.0
        %395 = vmatpush1.msra.mxu0 0.0
        %396 = vmatprep.subr.mxu0 0.0
        %397 = vmatpush1.msra.mxu0 0.0
        %398 = vmatprep.subr.mxu0 0.0
        %399 = vmatpush1.msra.mxu0 0.0
        %400 = vmatprep.mubr.f32.mxu0 0.0
        %401 = vmatmul.mubr.f32.gmra.mrb[0].mxu0 %v331
        %v402 = vpop.f32.mrb[0].mxu0
        %v403 = vadd.f32 %v322, %v402
        %v404 = vpop.f32.mrb[0].mxu0
        %405 = vmatprep.mubr.f32.mxu0 0.0
        %406 = vmatmul.mubr.f32.gmra.mrb[0].mxu0 %v334
        %v407 = vpop.f32.mrb[0].mxu0
        %v408 = vadd.f32 %v327, %v407
        %v409 = vpop.f32.mrb[0].mxu0
        %410 = vdwg.mxu0
        %411 = vst [vmem:[%s285] sm:$0xff] %v403
        %412 = vst [vmem:[%s285 + $0x8] sm:$0xff] %v408
        %s413 = sand.u32 %s146, 1
        %s414 = scalar_lea.sflag [#allocation4], %s413
        %s415 = sand.u32 %s146, 1
        %s416 = smul.addr %s415, 16
        %s417 = scalar_lea.vmem [#allocation5], %s416
        // Predicated region
        $region37: #{tpu_custom_call.1} parent=31 // pred_check
          %p418 = pneg %p156
        $region38: #{tpu_custom_call.1} parent=31 // pred_check_branch
          %420 = sbr.rel (%p418) target = $region40
        $region39: #{tpu_custom_call.1} parent=31 // pred_region
          %s421 = smul.u32 2, %s27
          %s423 = ssub.s32 256, 256
          %424 = vsyncadd %s414, %s423
          %s425 = sadd.s32 %s28, %s421
          %s426 = smul.addr %s26, 2
          %s427 = sadd.s32 %s425, %s426
          %s428 = smul.addr %s427, 128
          %s429 = scalar_lea.hbm %s3, %s428
          %s430 = sshll.u32 %s417, 4
          %s431 = int_to_ptr.vmem [resolvable:$true] %s430
          %436 = dma.vmem_to_hbm [thread:$0]  %s431, 256, %s429, %s414, 128, 128, 8
        $region40: #{tpu_custom_call.1} parent=31 // pred_fallthru
          _
      $region32: #{tpu_custom_call.1} parent=5 // pred_fallthru
        _
      %p437 = scmp.le.s32.totalorder 2, %s15
      // Predicated region
      $region41: #{tpu_custom_call.1} parent=5 // pred_check
        %p438 = pneg %p437
      $region42: #{tpu_custom_call.1} parent=5 // pred_check_branch
        %440 = sbr.rel (%p438) target = $region44
      $region43: #{tpu_custom_call.1} parent=5 // pred_region
        %s441 = ssub.s32 %s15, 2
        // Predicated region
        $region45: #{tpu_custom_call.1} parent=43 // pred_check
          %p442 = pneg %p162
        $region46: #{tpu_custom_call.1} parent=43 // pred_check_branch
          %444 = sbr.rel (%p442) target = $region48
        $region47: #{tpu_custom_call.1} parent=43 // pred_region
          %s445 = sand.u32 %s147, 1
          %s446 = scalar_lea.sflag [#allocation4], %s445
          %s447 = sand.u32 %s147, 1
          %s448 = smul.addr %s447, 16
          %s449 = scalar_lea.vmem [#allocation5], %s448
          %450 = dma.done %s446, 256
        $region48: #{tpu_custom_call.1} parent=43 // pred_fallthru
          _
      $region44: #{tpu_custom_call.1} parent=5 // pred_fallthru
        _
    $region6: #{tpu_custom_call.1} parent=1 // loop_footer
      %s19 = sadd.s32 1, %s15
    $region7: #{tpu_custom_call.1} parent=1 // loop_footer_branch
      %14 = sbr.rel target = $region3
    $region8: #{tpu_custom_call.1} parent=1 // loop_exit
      _
    %451 = vsyncpa [#allocation3], 1
    %s452 = scalar_lea.sflag [#allocation3], 1
    %453 = vsyncpa %s452, 1
    %454 = vsyncpa [#allocation4], 1
    %s455 = scalar_lea.sflag [#allocation4], 1
    %456 = vsyncpa %s455, 1

</llo_original>
